<compile_context>
chip_gen: v6e
topology: v6e:2x2x1
jax: 0.10.0
libtpu: 0.0.40
codegen_flags: <defaults>
</compile_context>

<pallas_src>
import jax
import jax.numpy as jnp
from jax.experimental import pallas as pl
from jax.experimental.pallas import tpu as pltpu


# ---------------------------------------------------------------------------
# Stage 1: QuantStub — fake-quantize the activation once (HBM-bandwidth bound)
# ---------------------------------------------------------------------------
def _quant_kernel(qp_ref, x_ref, xq_ref):
    # qp_ref : SMEM f32[2] = [1/s_x, zp_x]
    # x_ref  : VMEM f32[bm, bh]
    # xq_ref : VMEM i8/bf16[bm, bh]   (integer-valued quantized activations)
    inv_s = qp_ref[0]
    zp = qp_ref[1]
    q = jnp.clip(jnp.round(x_ref[...] * inv_s) + zp, -128.0, 127.0)
    xq_ref[...] = q.astype(xq_ref.dtype)


# ---------------------------------------------------------------------------
# Stage 2a: quantized Linear + DeQuantStub — native int8 MXU (v5e / v6e)
# ---------------------------------------------------------------------------
def _qmatmul_i8_kernel(scale_ref, xq_ref, wq_ref, bias_ref, o_ref, acc_ref):
    # scale_ref : SMEM f32[1]        = [s_x * s_w]
    # xq_ref    : VMEM i8 [tm, tk]
    # wq_ref    : VMEM i8 [tk, tn]
    # bias_ref  : VMEM f32[1, tn]    effective bias (zero-point correction folded)
    # o_ref     : VMEM f32[tm, tn]
    # acc_ref   : VMEM i32[tm, tn]   exact integer accumulator, persists over k
    k = pl.program_id(2)

    @pl.when(k == 0)
    def _():
        acc_ref[...] = jnp.zeros_like(acc_ref)

    acc_ref[...] += jnp.dot(xq_ref[...], wq_ref[...],
                            preferred_element_type=jnp.int32)

    @pl.when(k == pl.num_programs(2) - 1)
    def _():
        o_ref[...] = (acc_ref[...].astype(jnp.float32) * scale_ref[0]
                      + bias_ref[...])


# ---------------------------------------------------------------------------
# Stage 2b: bf16 MXU path (v7x — no integer MXU). Operands are pre-cast bf16
# (exact for integers in [-128,127]); accumulate directly into the resident
# f32 output block (out_specs ignores k), so no scratch accumulator is needed.
# ---------------------------------------------------------------------------
def _qmatmul_bf16_kernel(scale_ref, xq_ref, wq_ref, bias_ref, o_ref):
    k = pl.program_id(2)

    @pl.when(k == 0)
    def _():
        o_ref[...] = jnp.zeros_like(o_ref)

    o_ref[...] += jnp.dot(xq_ref[...], wq_ref[...],
                          preferred_element_type=jnp.float32)

    @pl.when(k == pl.num_programs(2) - 1)
    def _():
        o_ref[...] = o_ref[...] * scale_ref[0] + bias_ref[...]


def _default_use_int8_mxu():
    """int8 MXU on all TPU generations except v7x (bf16/fp8-only MXU)."""
    try:
        kind = jax.devices()[0].device_kind.lower()
    except Exception:
        return False
    return "v7" not in kind


# ---------------------------------------------------------------------------
# Wrapper
# ---------------------------------------------------------------------------
def quantized_model_forward(x, w_q, bias, s_x, zp_x, s_w,
                            *, tm=512, tn=1024, tk=512, use_int8_mxu=None):
    """x: f32[B, S, H]; w_q: i8[H, N]; bias: f32[N]. Returns f32[B, S, N]."""
    if use_int8_mxu is None:
        use_int8_mxu = _default_use_int8_mxu()

    B, S, H = x.shape
    N = w_q.shape[1]
    M = B * S
    x2d = x.reshape(M, H)

    s_x = jnp.asarray(s_x, jnp.float32)
    zp_x = jnp.asarray(zp_x, jnp.float32)
    s_w = jnp.asarray(s_w, jnp.float32)

    # Clamp preferred (large, lane-dense) tiles to the actual problem size.
    tm = min(tm, M)
    tn = min(tn, N)
    tk = min(tk, H)
    assert M % tm == 0 and N % tn == 0 and H % tk == 0, \
        "demo requires tile-divisible shapes"  # TODO(synk): ragged-edge masking
    assert (tm % 8 == 0 or tm == M) and tn % 128 == 0 and tk % 128 == 0, \
        "tiles must be (8,128)-aligned"

    act_dtype = jnp.int8 if use_int8_mxu else jnp.bfloat16

    # ---- Stage 1: quantize activations (QuantStub), done exactly once ------
    q_rows = min(512, M)
    q_cols = min(2048, H)
    assert M % q_rows == 0 and H % q_cols == 0
    qp = jnp.stack([1.0 / s_x, zp_x]).astype(jnp.float32)
    xq = pl.pallas_call(
        _quant_kernel,
        out_shape=jax.ShapeDtypeStruct((M, H), act_dtype),
        grid_spec=pltpu.PrefetchScalarGridSpec(
            num_scalar_prefetch=0,
            grid=(M // q_rows, H // q_cols),
            in_specs=[
                pl.BlockSpec(memory_space=pltpu.MemorySpace.SMEM),   # qparams
                pl.BlockSpec((q_rows, q_cols), lambda i, j: (i, j)),  # x
            ],
            out_specs=pl.BlockSpec((q_rows, q_cols), lambda i, j: (i, j)),
        ),
        compiler_params=pltpu.CompilerParams(
            dimension_semantics=("parallel", "parallel")),
    )(qp, x2d)

    # ---- Stage 2: quantized Linear + DeQuantStub ----------------------------
    #   y = s_x*s_w * (x_q - zp_x) @ w_q + b
    #     = s_x*s_w * (x_q @ w_q) + (b - s_x*s_w*zp_x * colsum(w_q))
    scale = jnp.reshape(s_x * s_w, (1,)).astype(jnp.float32)
    w_colsum = jnp.sum(w_q.astype(jnp.float32), axis=0)
    bias_eff = (bias.astype(jnp.float32)
                - (s_x * s_w * zp_x) * w_colsum).reshape(1, N)

    # Weight operand: raw int8 on the integer-MXU path; pre-cast to bf16 once
    # in the wrapper on the bf16 path (cast hoisted out of the hot loop).
    w_op = w_q if use_int8_mxu else w_q.astype(jnp.bfloat16)

    n_i, n_j, n_k = M // tm, N // tn, H // tk
    elt = 1 if use_int8_mxu else 2

    cost = pl.CostEstimate(
        flops=2 * M * N * H,
        transcendentals=0,
        bytes_accessed=(M * H * elt * n_j       # x_q streamed once per N tile
                        + H * N * elt * n_i     # w streamed once per M tile
                        + N * 4 * n_i           # bias per M tile
                        + M * N * 4),           # output written once
    )

    # VMEM footprint (double-buffered inputs/bias/out + accumulator scratch);
    # sized to fit v7x's 64 MiB as well.
    vmem_bytes = 2 * (tm * tk * elt + tk * tn * elt + tn * 4 + tm * tn * 4)
    if use_int8_mxu:
        vmem_bytes += tm * tn * 4
    vmem_limit = int(min(max(vmem_bytes * 2, 32 * 1024 * 1024),
                         56 * 1024 * 1024))

    if use_int8_mxu:
        kernel = _qmatmul_i8_kernel
        scratch = [pltpu.VMEM((tm, tn), jnp.int32)]
    else:
        kernel = _qmatmul_bf16_kernel
        scratch = []

    out2d = pl.pallas_call(
        kernel,
        out_shape=jax.ShapeDtypeStruct((M, N), jnp.float32),
        grid_spec=pltpu.PrefetchScalarGridSpec(
            num_scalar_prefetch=0,
            grid=(n_i, n_j, n_k),
            in_specs=[
                pl.BlockSpec(memory_space=pltpu.MemorySpace.SMEM),   # scale
                pl.BlockSpec((tm, tk), lambda i, j, k: (i, k)),      # x_q
                pl.BlockSpec((tk, tn), lambda i, j, k: (k, j)),      # w
                pl.BlockSpec((1, tn), lambda i, j, k: (0, j)),       # bias_eff
            ],
            out_specs=pl.BlockSpec((tm, tn), lambda i, j, k: (i, j)),
            scratch_shapes=scratch,
        ),
        compiler_params=pltpu.CompilerParams(
            dimension_semantics=("parallel", "parallel", "arbitrary"),
            vmem_limit_bytes=vmem_limit,
        ),
        cost_estimate=cost,
    )(scale, xq, w_op, bias_eff)

    return out2d.reshape(B, S, N)


if __name__ == "__main__":
    key = jax.random.PRNGKey(0)
    k_x, k_w, k_b = jax.random.split(key, 3)

    # Small GPT-J-style shapes that still exercise the K-accumulation loop
    # (grid k-axis has 2 steps with the clamped tk=512).
    B, S, H, N = 2, 64, 1024, 512

    x = jax.random.normal(k_x, (B, S, H), dtype=jnp.float32)

    # fp32 weights for the wrapped nn.Linear(H, N), then per-tensor symmetric
    # int8 quantization of the weight in plain JAX (weight prep, done once).
    w_fp = jax.random.normal(k_w, (H, N), dtype=jnp.float32) * 0.1
    bias = jax.random.normal(k_b, (N,), dtype=jnp.float32) * 0.01

    s_w = jnp.max(jnp.abs(w_fp)) / 127.0
    w_q = jnp.clip(jnp.round(w_fp / s_w), -127, 127).astype(jnp.int8)

    # Activation quantization params (as from a calibration observer).
    s_x = jnp.float32(0.03125)   # power of two -> exact reciprocal
    zp_x = jnp.float32(4.0)      # nonzero zero-point exercises the correction

    out = quantized_model_forward(x, w_q, bias, s_x, zp_x, s_w)
    jax.block_until_ready(out)

    # Pure-JAX reference of the same fake-quant math.
    x_q_ref = jnp.clip(jnp.round(x / s_x) + zp_x, -128.0, 127.0)
    x_dq_ref = (x_q_ref - zp_x) * s_x
    ref = jnp.einsum("bsh,hn->bsn", x_dq_ref,
                     w_q.astype(jnp.float32) * s_w) + bias
    assert jnp.allclose(out, ref, atol=2e-3, rtol=2e-3), \
        float(jnp.max(jnp.abs(out - ref)))

    print("KERNEL_OK")
</pallas_src>

<mosaic_0001>
module attributes {stable_mosaic.version = 11 : i64} {
  func.func @_quant_kernel(%arg0: i32, %arg1: i32, %arg2: memref<2xf32, #tpu.memory_space<smem>>, %arg3: memref<128x1024xf32, #tpu.memory_space<vmem>>, %arg4: memref<128x1024xi8, #tpu.memory_space<vmem>>) attributes {dimension_semantics = [#tpu.dimension_semantics<parallel>, #tpu.dimension_semantics<parallel>], iteration_bounds = array<i64: 1, 1>, scalar_prefetch = 0 : i64, scratch_operands = 0 : i64, tpu.core_type = #tpu.core_type<tc>, window_params = [{transform_indices = @transform_0, window_bounds = array<i64: 2>}, {transform_indices = @transform_1, window_bounds = array<i64: 128, 1024>}, {transform_indices = @transform_2, window_bounds = array<i64: 128, 1024>}]} {
    %c0 = arith.constant 0 : index
    %0 = memref.load %arg2[%c0] : memref<2xf32, #tpu.memory_space<smem>>
    %c1 = arith.constant 1 : index
    %1 = memref.load %arg2[%c1] : memref<2xf32, #tpu.memory_space<smem>>
    %c0_0 = arith.constant 0 : index
    %c0_1 = arith.constant 0 : index
    %2 = vector.load %arg3[%c0_0, %c0_1] : memref<128x1024xf32, #tpu.memory_space<vmem>>, vector<128x1024xf32>
    %3 = vector.broadcast %0 : f32 to vector<128x1024xf32>
    %4 = arith.mulf %2, %3 : vector<128x1024xf32>
    %5 = math.roundeven %4 : vector<128x1024xf32>
    %6 = vector.broadcast %1 : f32 to vector<128x1024xf32>
    %7 = arith.addf %5, %6 : vector<128x1024xf32>
    %cst = arith.constant -1.280000e+02 : f32
    %cst_2 = arith.constant 1.270000e+02 : f32
    %8 = vector.broadcast %cst : f32 to vector<128x1024xf32>
    %9 = arith.maximumf %8, %7 : vector<128x1024xf32>
    %10 = vector.broadcast %cst_2 : f32 to vector<128x1024xf32>
    %11 = arith.minimumf %10, %9 : vector<128x1024xf32>
    %12 = arith.fptosi %11 : vector<128x1024xf32> to vector<128x1024xi8>
    %c0_3 = arith.constant 0 : index
    %c0_4 = arith.constant 0 : index
    %13 = vector.load %arg4[%c0_3, %c0_4] : memref<128x1024xi8, #tpu.memory_space<vmem>>, vector<128x1024xi8>
    tpu.vector_store %arg4[%c0_3, %c0_4], %12 {strides = array<i32>} : memref<128x1024xi8, #tpu.memory_space<vmem>>, vector<128x1024xi8>,
    return
  }
  func.func @transform_0(%arg0: i32, %arg1: i32) -> i32 {
    %c0_i32 = arith.constant 0 : i32
    %c0_i32_0 = arith.constant 0 : i32
    return %c0_i32 : i32
  }
  func.func @transform_1(%arg0: i32, %arg1: i32) -> (i32, i32) {
    %c0_i32 = arith.constant 0 : i32
    return %arg0, %arg1 : i32, i32
  }
  func.func @transform_2(%arg0: i32, %arg1: i32) -> (i32, i32) {
    %c0_i32 = arith.constant 0 : i32
    return %arg0, %arg1 : i32, i32
  }
}

</mosaic_0001>

<llo_original>
// kernel: tpu_custom_call.1
$region0: #{tpu_custom_call.1}
  #allocation0 [shape = 'u32[]', space=smem, size = 0x4, offset = 0x4, fixed_abs, tag = 'smem constant byte address 0x4 - core index']
  #allocation1 [shape = 'u32[144,128]{1,0:T(1,128)}', space=vmem, size = 0x12000, scoped, tag = 'internal scratch']
  %s0 = inlined_call_operand.hbm [shape: f32[2], index: 0, kind: input, shape index: {}]
  %s1 = inlined_call_operand.hbm [shape: f32[128,1024], index: 1, kind: input, shape index: {}]
  %s2 = inlined_call_operand.hbm [shape: s8[128,1024], index: 2, kind: output, shape index: {}]
  %s3 = sld [smem:[#allocation0]]
  $region26: #{tpu_custom_call.1} parent=0
    _
  %s5 = ssub.s32 1, %s3
  %s6 = scalar_select 0, %s5, %s3
  $region1: #{tpu_custom_call.1} parent=0
    #allocation2 [shape = 'u8[512]{0}', space=smem, size = 0x200, scoped, tag = 'input window, operand 0, single buffered']
    #allocation3 [shape = 's32[1]{0}', space=sflag, size = 0x4, scoped, tag = 'scoped memory for tpu_custom_call.1']
    #allocation4 [shape = 's32[1]{0}', space=sflag, size = 0x4, scoped, tag = 'scoped memory for tpu_custom_call.1']
    #allocation5 [shape = 's32[1]{0}', space=sflag, size = 0x4, scoped, tag = 'scoped memory for tpu_custom_call.1']
    #allocation6 [shape = 'u8[524288]{0}', space=vmem, size = 0x80000, scoped, tag = 'input window, operand 1, single buffered']
    #allocation7 [shape = 'u8[131072]{0}', space=vmem, size = 0x20000, scoped, tag = 'output window, operand 0, single buffered']
    %7 = vsyncpa [#allocation5], 0
    %8 = vsyncpa [#allocation3], 0
    %9 = vsyncpa [#allocation4], 0
    // Predicated region
    $region2: #{tpu_custom_call.1} parent=1 // pred_check
      _
    $region3: #{tpu_custom_call.1} parent=1 // pred_check_branch
      %11 = sbr.rel (0) target = $region5
    $region4: #{tpu_custom_call.1} parent=1 // pred_region
      %s13 = ssub.s32 16, 16
      %14 = vsyncadd [#allocation5], %s13
      %17 = dma.hbm_to_smem %s0, 16, [#allocation2], [#allocation5]
    $region5: #{tpu_custom_call.1} parent=1 // pred_fallthru
      _
    // Predicated region
    $region6: #{tpu_custom_call.1} parent=1 // pred_check
      _
    $region7: #{tpu_custom_call.1} parent=1 // pred_check_branch
      %19 = sbr.rel (0) target = $region9
    $region8: #{tpu_custom_call.1} parent=1 // pred_region
      %s21 = ssub.s32 16384, 16384
      %22 = vsyncadd [#allocation3], %s21
      %s23 = sshll.u32 [#allocation6], 4
      %s24 = int_to_ptr.vmem [resolvable:$true] %s23
      %29 = dma.hbm_to_vmem [thread:$0]  %s1, 16384, %s24, [#allocation3], 1024, 1024, 64
    $region9: #{tpu_custom_call.1} parent=1 // pred_fallthru
      _
    // Predicated region
    $region10: #{tpu_custom_call.1} parent=1 // pred_check
      _
    $region11: #{tpu_custom_call.1} parent=1 // pred_check_branch
      %31 = sbr.rel (0) target = $region13
    $region12: #{tpu_custom_call.1} parent=1 // pred_region
      %32 = dma.done [#allocation5], 16
    $region13: #{tpu_custom_call.1} parent=1 // pred_fallthru
      _
    // Predicated region
    $region14: #{tpu_custom_call.1} parent=1 // pred_check
      _
    $region15: #{tpu_custom_call.1} parent=1 // pred_check_branch
      %34 = sbr.rel (0) target = $region17
    $region16: #{tpu_custom_call.1} parent=1 // pred_region
      %35 = dma.done [#allocation3], 16384
    $region17: #{tpu_custom_call.1} parent=1 // pred_fallthru
      _
    %36 = sfence
    %s37 = sld [smem:[#allocation2]]
    %s38 = sld [smem:[#allocation2 + $0x1]]
    %v39 = vld [vmem:[#allocation6] sm:$0xff]
    %v40 = vld [vmem:[#allocation6 + $0x8] sm:$0xff]
    %v41 = vld [vmem:[#allocation6 + $0x10] sm:$0xff]
    %v42 = vld [vmem:[#allocation6 + $0x18] sm:$0xff]
    %v43 = vld [vmem:[#allocation6 + $0x20] sm:$0xff]
    %v44 = vld [vmem:[#allocation6 + $0x28] sm:$0xff]
    %v45 = vld [vmem:[#allocation6 + $0x30] sm:$0xff]
    %v46 = vld [vmem:[#allocation6 + $0x38] sm:$0xff]
    %v47 = vld [vmem:[#allocation6 + $0x40] sm:$0xff]
    %v48 = vld [vmem:[#allocation6 + $0x48] sm:$0xff]
    %v49 = vld [vmem:[#allocation6 + $0x50] sm:$0xff]
    %v50 = vld [vmem:[#allocation6 + $0x58] sm:$0xff]
    %v51 = vld [vmem:[#allocation6 + $0x60] sm:$0xff]
    %v52 = vld [vmem:[#allocation6 + $0x68] sm:$0xff]
    %v53 = vld [vmem:[#allocation6 + $0x70] sm:$0xff]
    %v54 = vld [vmem:[#allocation6 + $0x78] sm:$0xff]
    %v55 = vld [vmem:[#allocation6 + $0x80] sm:$0xff]
    %v56 = vld [vmem:[#allocation6 + $0x88] sm:$0xff]
    %v57 = vld [vmem:[#allocation6 + $0x90] sm:$0xff]
    %v58 = vld [vmem:[#allocation6 + $0x98] sm:$0xff]
    %v59 = vld [vmem:[#allocation6 + $0xa0] sm:$0xff]
    %v60 = vld [vmem:[#allocation6 + $0xa8] sm:$0xff]
    %v61 = vld [vmem:[#allocation6 + $0xb0] sm:$0xff]
    %v62 = vld [vmem:[#allocation6 + $0xb8] sm:$0xff]
    %v63 = vld [vmem:[#allocation6 + $0xc0] sm:$0xff]
    %v64 = vld [vmem:[#allocation6 + $0xc8] sm:$0xff]
    %v65 = vld [vmem:[#allocation6 + $0xd0] sm:$0xff]
    %v66 = vld [vmem:[#allocation6 + $0xd8] sm:$0xff]
    %v67 = vld [vmem:[#allocation6 + $0xe0] sm:$0xff]
    %v68 = vld [vmem:[#allocation6 + $0xe8] sm:$0xff]
    %v69 = vld [vmem:[#allocation6 + $0xf0] sm:$0xff]
    %v70 = vld [vmem:[#allocation6 + $0xf8] sm:$0xff]
    %v71 = vld [vmem:[#allocation6 + $0x100] sm:$0xff]
    %v72 = vld [vmem:[#allocation6 + $0x108] sm:$0xff]
    %v73 = vld [vmem:[#allocation6 + $0x110] sm:$0xff]
    %v74 = vld [vmem:[#allocation6 + $0x118] sm:$0xff]
    %v75 = vld [vmem:[#allocation6 + $0x120] sm:$0xff]
    %v76 = vld [vmem:[#allocation6 + $0x128] sm:$0xff]
    %v77 = vld [vmem:[#allocation6 + $0x130] sm:$0xff]
    %v78 = vld [vmem:[#allocation6 + $0x138] sm:$0xff]
    %v79 = vld [vmem:[#allocation6 + $0x140] sm:$0xff]
    %v80 = vld [vmem:[#allocation6 + $0x148] sm:$0xff]
    %v81 = vld [vmem:[#allocation6 + $0x150] sm:$0xff]
    %v82 = vld [vmem:[#allocation6 + $0x158] sm:$0xff]
    %v83 = vld [vmem:[#allocation6 + $0x160] sm:$0xff]
    %v84 = vld [vmem:[#allocation6 + $0x168] sm:$0xff]
    %v85 = vld [vmem:[#allocation6 + $0x170] sm:$0xff]
    %v86 = vld [vmem:[#allocation6 + $0x178] sm:$0xff]
    %v87 = vld [vmem:[#allocation6 + $0x180] sm:$0xff]
    %v88 = vld [vmem:[#allocation6 + $0x188] sm:$0xff]
    %v89 = vld [vmem:[#allocation6 + $0x190] sm:$0xff]
    %v90 = vld [vmem:[#allocation6 + $0x198] sm:$0xff]
    %v91 = vld [vmem:[#allocation6 + $0x1a0] sm:$0xff]
    %v92 = vld [vmem:[#allocation6 + $0x1a8] sm:$0xff]
    %v93 = vld [vmem:[#allocation6 + $0x1b0] sm:$0xff]
    %v94 = vld [vmem:[#allocation6 + $0x1b8] sm:$0xff]
    %v95 = vld [vmem:[#allocation6 + $0x1c0] sm:$0xff]
    %v96 = vld [vmem:[#allocation6 + $0x1c8] sm:$0xff]
    %v97 = vld [vmem:[#allocation6 + $0x1d0] sm:$0xff]
    %v98 = vld [vmem:[#allocation6 + $0x1d8] sm:$0xff]
    %v99 = vld [vmem:[#allocation6 + $0x1e0] sm:$0xff]
    %v100 = vld [vmem:[#allocation6 + $0x1e8] sm:$0xff]
    %v101 = vld [vmem:[#allocation6 + $0x1f0] sm:$0xff]
    %v102 = vld [vmem:[#allocation6 + $0x1f8] sm:$0xff]
    %v103 = vld [vmem:[#allocation6 + $0x200] sm:$0xff]
    %v104 = vld [vmem:[#allocation6 + $0x208] sm:$0xff]
    %v105 = vld [vmem:[#allocation6 + $0x210] sm:$0xff]
    %v106 = vld [vmem:[#allocation6 + $0x218] sm:$0xff]
    %v107 = vld [vmem:[#allocation6 + $0x220] sm:$0xff]
    %v108 = vld [vmem:[#allocation6 + $0x228] sm:$0xff]
    %v109 = vld [vmem:[#allocation6 + $0x230] sm:$0xff]
    %v110 = vld [vmem:[#allocation6 + $0x238] sm:$0xff]
    %v111 = vld [vmem:[#allocation6 + $0x240] sm:$0xff]
    %v112 = vld [vmem:[#allocation6 + $0x248] sm:$0xff]
    %v113 = vld [vmem:[#allocation6 + $0x250] sm:$0xff]
    %v114 = vld [vmem:[#allocation6 + $0x258] sm:$0xff]
    %v115 = vld [vmem:[#allocation6 + $0x260] sm:$0xff]
    %v116 = vld [vmem:[#allocation6 + $0x268] sm:$0xff]
    %v117 = vld [vmem:[#allocation6 + $0x270] sm:$0xff]
    %v118 = vld [vmem:[#allocation6 + $0x278] sm:$0xff]
    %v119 = vld [vmem:[#allocation6 + $0x280] sm:$0xff]
    %v120 = vld [vmem:[#allocation6 + $0x288] sm:$0xff]
    %v121 = vld [vmem:[#allocation6 + $0x290] sm:$0xff]
    %v122 = vld [vmem:[#allocation6 + $0x298] sm:$0xff]
    %v123 = vld [vmem:[#allocation6 + $0x2a0] sm:$0xff]
    %v124 = vld [vmem:[#allocation6 + $0x2a8] sm:$0xff]
    %v125 = vld [vmem:[#allocation6 + $0x2b0] sm:$0xff]
    %v126 = vld [vmem:[#allocation6 + $0x2b8] sm:$0xff]
    %v127 = vld [vmem:[#allocation6 + $0x2c0] sm:$0xff]
    %v128 = vld [vmem:[#allocation6 + $0x2c8] sm:$0xff]
    %v129 = vld [vmem:[#allocation6 + $0x2d0] sm:$0xff]
    %v130 = vld [vmem:[#allocation6 + $0x2d8] sm:$0xff]
    %v131 = vld [vmem:[#allocation6 + $0x2e0] sm:$0xff]
    %v132 = vld [vmem:[#allocation6 + $0x2e8] sm:$0xff]
    %v133 = vld [vmem:[#allocation6 + $0x2f0] sm:$0xff]
    %v134 = vld [vmem:[#allocation6 + $0x2f8] sm:$0xff]
    %v135 = vld [vmem:[#allocation6 + $0x300] sm:$0xff]
    %v136 = vld [vmem:[#allocation6 + $0x308] sm:$0xff]
    %v137 = vld [vmem:[#allocation6 + $0x310] sm:$0xff]
    %v138 = vld [vmem:[#allocation6 + $0x318] sm:$0xff]
    %v139 = vld [vmem:[#allocation6 + $0x320] sm:$0xff]
    %v140 = vld [vmem:[#allocation6 + $0x328] sm:$0xff]
    %v141 = vld [vmem:[#allocation6 + $0x330] sm:$0xff]
    %v142 = vld [vmem:[#allocation6 + $0x338] sm:$0xff]
    %v143 = vld [vmem:[#allocation6 + $0x340] sm:$0xff]
    %v144 = vld [vmem:[#allocation6 + $0x348] sm:$0xff]
    %v145 = vld [vmem:[#allocation6 + $0x350] sm:$0xff]
    %v146 = vld [vmem:[#allocation6 + $0x358] sm:$0xff]
    %v147 = vld [vmem:[#allocation6 + $0x360] sm:$0xff]
    %v148 = vld [vmem:[#allocation6 + $0x368] sm:$0xff]
    %v149 = vld [vmem:[#allocation6 + $0x370] sm:$0xff]
    %v150 = vld [vmem:[#allocation6 + $0x378] sm:$0xff]
    %v151 = vld [vmem:[#allocation6 + $0x380] sm:$0xff]
    %v152 = vld [vmem:[#allocation6 + $0x388] sm:$0xff]
    %v153 = vld [vmem:[#allocation6 + $0x390] sm:$0xff]
    %v154 = vld [vmem:[#allocation6 + $0x398] sm:$0xff]
    %v155 = vld [vmem:[#allocation6 + $0x3a0] sm:$0xff]
    %v156 = vld [vmem:[#allocation6 + $0x3a8] sm:$0xff]
    %v157 = vld [vmem:[#allocation6 + $0x3b0] sm:$0xff]
    %v158 = vld [vmem:[#allocation6 + $0x3b8] sm:$0xff]
    %v159 = vld [vmem:[#allocation6 + $0x3c0] sm:$0xff]
    %v160 = vld [vmem:[#allocation6 + $0x3c8] sm:$0xff]
    %v161 = vld [vmem:[#allocation6 + $0x3d0] sm:$0xff]
    %v162 = vld [vmem:[#allocation6 + $0x3d8] sm:$0xff]
    %v163 = vld [vmem:[#allocation6 + $0x3e0] sm:$0xff]
    %v164 = vld [vmem:[#allocation6 + $0x3e8] sm:$0xff]
    %v165 = vld [vmem:[#allocation6 + $0x3f0] sm:$0xff]
    %v166 = vld [vmem:[#allocation6 + $0x3f8] sm:$0xff]
    %v167 = vstv %s37
    %v168 = vmul.f32 %v39, %v167
    %v169 = vmul.f32 %v40, %v167
    %v170 = vmul.f32 %v41, %v167
    %v171 = vmul.f32 %v42, %v167
    %v172 = vmul.f32 %v43, %v167
    %v173 = vmul.f32 %v44, %v167
    %v174 = vmul.f32 %v45, %v167
    %v175 = vmul.f32 %v46, %v167
    %v176 = vmul.f32 %v47, %v167
    %v177 = vmul.f32 %v48, %v167
    %v178 = vmul.f32 %v49, %v167
    %v179 = vmul.f32 %v50, %v167
    %v180 = vmul.f32 %v51, %v167
    %v181 = vmul.f32 %v52, %v167
    %v182 = vmul.f32 %v53, %v167
    %v183 = vmul.f32 %v54, %v167
    %v184 = vmul.f32 %v55, %v167
    %v185 = vmul.f32 %v56, %v167
    %v186 = vmul.f32 %v57, %v167
    %v187 = vmul.f32 %v58, %v167
    %v188 = vmul.f32 %v59, %v167
    %v189 = vmul.f32 %v60, %v167
    %v190 = vmul.f32 %v61, %v167
    %v191 = vmul.f32 %v62, %v167
    %v192 = vmul.f32 %v63, %v167
    %v193 = vmul.f32 %v64, %v167
    %v194 = vmul.f32 %v65, %v167
    %v195 = vmul.f32 %v66, %v167
    %v196 = vmul.f32 %v67, %v167
    %v197 = vmul.f32 %v68, %v167
    %v198 = vmul.f32 %v69, %v167
    %v199 = vmul.f32 %v70, %v167
    %v200 = vmul.f32 %v71, %v167
    %v201 = vmul.f32 %v72, %v167
    %v202 = vmul.f32 %v73, %v167
    %v203 = vmul.f32 %v74, %v167
    %v204 = vmul.f32 %v75, %v167
    %v205 = vmul.f32 %v76, %v167
    %v206 = vmul.f32 %v77, %v167
    %v207 = vmul.f32 %v78, %v167
    %v208 = vmul.f32 %v79, %v167
    %v209 = vmul.f32 %v80, %v167
    %v210 = vmul.f32 %v81, %v167
    %v211 = vmul.f32 %v82, %v167
    %v212 = vmul.f32 %v83, %v167
    %v213 = vmul.f32 %v84, %v167
    %v214 = vmul.f32 %v85, %v167
    %v215 = vmul.f32 %v86, %v167
    %v216 = vmul.f32 %v87, %v167
    %v217 = vmul.f32 %v88, %v167
    %v218 = vmul.f32 %v89, %v167
    %v219 = vmul.f32 %v90, %v167
    %v220 = vmul.f32 %v91, %v167
    %v221 = vmul.f32 %v92, %v167
    %v222 = vmul.f32 %v93, %v167
    %v223 = vmul.f32 %v94, %v167
    %v224 = vmul.f32 %v95, %v167
    %v225 = vmul.f32 %v96, %v167
    %v226 = vmul.f32 %v97, %v167
    %v227 = vmul.f32 %v98, %v167
    %v228 = vmul.f32 %v99, %v167
    %v229 = vmul.f32 %v100, %v167
    %v230 = vmul.f32 %v101, %v167
    %v231 = vmul.f32 %v102, %v167
    %v232 = vmul.f32 %v103, %v167
    %v233 = vmul.f32 %v104, %v167
    %v234 = vmul.f32 %v105, %v167
    %v235 = vmul.f32 %v106, %v167
    %v236 = vmul.f32 %v107, %v167
    %v237 = vmul.f32 %v108, %v167
    %v238 = vmul.f32 %v109, %v167
    %v239 = vmul.f32 %v110, %v167
    %v240 = vmul.f32 %v111, %v167
    %v241 = vmul.f32 %v112, %v167
    %v242 = vmul.f32 %v113, %v167
    %v243 = vmul.f32 %v114, %v167
    %v244 = vmul.f32 %v115, %v167
    %v245 = vmul.f32 %v116, %v167
    %v246 = vmul.f32 %v117, %v167
    %v247 = vmul.f32 %v118, %v167
    %v248 = vmul.f32 %v119, %v167
    %v249 = vmul.f32 %v120, %v167
    %v250 = vmul.f32 %v121, %v167
    %v251 = vmul.f32 %v122, %v167
    %v252 = vmul.f32 %v123, %v167
    %v253 = vmul.f32 %v124, %v167
    %v254 = vmul.f32 %v125, %v167
    %v255 = vmul.f32 %v126, %v167
    %v256 = vmul.f32 %v127, %v167
    %v257 = vmul.f32 %v128, %v167
    %v258 = vmul.f32 %v129, %v167
    %v259 = vmul.f32 %v130, %v167
    %v260 = vmul.f32 %v131, %v167
    %v261 = vmul.f32 %v132, %v167
    %v262 = vmul.f32 %v133, %v167
    %v263 = vmul.f32 %v134, %v167
    %v264 = vmul.f32 %v135, %v167
    %v265 = vmul.f32 %v136, %v167
    %v266 = vmul.f32 %v137, %v167
    %v267 = vmul.f32 %v138, %v167
    %v268 = vmul.f32 %v139, %v167
    %v269 = vmul.f32 %v140, %v167
    %v270 = vmul.f32 %v141, %v167
    %v271 = vmul.f32 %v142, %v167
    %v272 = vmul.f32 %v143, %v167
    %v273 = vmul.f32 %v144, %v167
    %v274 = vmul.f32 %v145, %v167
    %v275 = vmul.f32 %v146, %v167
    %v276 = vmul.f32 %v147, %v167
    %v277 = vmul.f32 %v148, %v167
    %v278 = vmul.f32 %v149, %v167
    %v279 = vmul.f32 %v150, %v167
    %v280 = vmul.f32 %v151, %v167
    %v281 = vmul.f32 %v152, %v167
    %v282 = vmul.f32 %v153, %v167
    %v283 = vmul.f32 %v154, %v167
    %v284 = vmul.f32 %v155, %v167
    %v285 = vmul.f32 %v156, %v167
    %v286 = vmul.f32 %v157, %v167
    %v287 = vmul.f32 %v158, %v167
    %v288 = vmul.f32 %v159, %v167
    %v289 = vmul.f32 %v160, %v167
    %v290 = vmul.f32 %v161, %v167
    %v291 = vmul.f32 %v162, %v167
    %v292 = vmul.f32 %v163, %v167
    %v293 = vmul.f32 %v164, %v167
    %v294 = vmul.f32 %v165, %v167
    %v295 = vmul.f32 %v166, %v167
    %v296 = vround.ne.pseudo %v168
    %v297 = vround.ne.pseudo %v169
    %v298 = vround.ne.pseudo %v170
    %v299 = vround.ne.pseudo %v171
    %v300 = vround.ne.pseudo %v172
    %v301 = vround.ne.pseudo %v173
    %v302 = vround.ne.pseudo %v174
    %v303 = vround.ne.pseudo %v175
    %v304 = vround.ne.pseudo %v176
    %v305 = vround.ne.pseudo %v177
    %v306 = vround.ne.pseudo %v178
    %v307 = vround.ne.pseudo %v179
    %v308 = vround.ne.pseudo %v180
    %v309 = vround.ne.pseudo %v181
    %v310 = vround.ne.pseudo %v182
    %v311 = vround.ne.pseudo %v183
    %v312 = vround.ne.pseudo %v184
    %v313 = vround.ne.pseudo %v185
    %v314 = vround.ne.pseudo %v186
    %v315 = vround.ne.pseudo %v187
    %v316 = vround.ne.pseudo %v188
    %v317 = vround.ne.pseudo %v189
    %v318 = vround.ne.pseudo %v190
    %v319 = vround.ne.pseudo %v191
    %v320 = vround.ne.pseudo %v192
    %v321 = vround.ne.pseudo %v193
    %v322 = vround.ne.pseudo %v194
    %v323 = vround.ne.pseudo %v195
    %v324 = vround.ne.pseudo %v196
    %v325 = vround.ne.pseudo %v197
    %v326 = vround.ne.pseudo %v198
    %v327 = vround.ne.pseudo %v199
    %v328 = vround.ne.pseudo %v200
    %v329 = vround.ne.pseudo %v201
    %v330 = vround.ne.pseudo %v202
    %v331 = vround.ne.pseudo %v203
    %v332 = vround.ne.pseudo %v204
    %v333 = vround.ne.pseudo %v205
    %v334 = vround.ne.pseudo %v206
    %v335 = vround.ne.pseudo %v207
    %v336 = vround.ne.pseudo %v208
    %v337 = vround.ne.pseudo %v209
    %v338 = vround.ne.pseudo %v210
    %v339 = vround.ne.pseudo %v211
    %v340 = vround.ne.pseudo %v212
    %v341 = vround.ne.pseudo %v213
    %v342 = vround.ne.pseudo %v214
    %v343 = vround.ne.pseudo %v215
    %v344 = vround.ne.pseudo %v216
    %v345 = vround.ne.pseudo %v217
    %v346 = vround.ne.pseudo %v218
    %v347 = vround.ne.pseudo %v219
    %v348 = vround.ne.pseudo %v220
    %v349 = vround.ne.pseudo %v221
    %v350 = vround.ne.pseudo %v222
    %v351 = vround.ne.pseudo %v223
    %v352 = vround.ne.pseudo %v224
    %v353 = vround.ne.pseudo %v225
    %v354 = vround.ne.pseudo %v226
    %v355 = vround.ne.pseudo %v227
    %v356 = vround.ne.pseudo %v228
    %v357 = vround.ne.pseudo %v229
    %v358 = vround.ne.pseudo %v230
    %v359 = vround.ne.pseudo %v231
    %v360 = vround.ne.pseudo %v232
    %v361 = vround.ne.pseudo %v233
    %v362 = vround.ne.pseudo %v234
    %v363 = vround.ne.pseudo %v235
    %v364 = vround.ne.pseudo %v236
    %v365 = vround.ne.pseudo %v237
    %v366 = vround.ne.pseudo %v238
    %v367 = vround.ne.pseudo %v239
    %v368 = vround.ne.pseudo %v240
    %v369 = vround.ne.pseudo %v241
    %v370 = vround.ne.pseudo %v242
    %v371 = vround.ne.pseudo %v243
    %v372 = vround.ne.pseudo %v244
    %v373 = vround.ne.pseudo %v245
    %v374 = vround.ne.pseudo %v246
    %v375 = vround.ne.pseudo %v247
    %v376 = vround.ne.pseudo %v248
    %v377 = vround.ne.pseudo %v249
    %v378 = vround.ne.pseudo %v250
    %v379 = vround.ne.pseudo %v251
    %v380 = vround.ne.pseudo %v252
    %v381 = vround.ne.pseudo %v253
    %v382 = vround.ne.pseudo %v254
    %v383 = vround.ne.pseudo %v255
    %v384 = vround.ne.pseudo %v256
    %v385 = vround.ne.pseudo %v257
    %v386 = vround.ne.pseudo %v258
    %v387 = vround.ne.pseudo %v259
    %v388 = vround.ne.pseudo %v260
    %v389 = vround.ne.pseudo %v261
    %v390 = vround.ne.pseudo %v262
    %v391 = vround.ne.pseudo %v263
    %v392 = vround.ne.pseudo %v264
    %v393 = vround.ne.pseudo %v265
    %v394 = vround.ne.pseudo %v266
    %v395 = vround.ne.pseudo %v267
    %v396 = vround.ne.pseudo %v268
    %v397 = vround.ne.pseudo %v269
    %v398 = vround.ne.pseudo %v270
    %v399 = vround.ne.pseudo %v271
    %v400 = vround.ne.pseudo %v272
    %v401 = vround.ne.pseudo %v273
    %v402 = vround.ne.pseudo %v274
    %v403 = vround.ne.pseudo %v275
    %v404 = vround.ne.pseudo %v276
    %v405 = vround.ne.pseudo %v277
    %v406 = vround.ne.pseudo %v278
    %v407 = vround.ne.pseudo %v279
    %v408 = vround.ne.pseudo %v280
    %v409 = vround.ne.pseudo %v281
    %v410 = vround.ne.pseudo %v282
    %v411 = vround.ne.pseudo %v283
    %v412 = vround.ne.pseudo %v284
    %v413 = vround.ne.pseudo %v285
    %v414 = vround.ne.pseudo %v286
    %v415 = vround.ne.pseudo %v287
    %v416 = vround.ne.pseudo %v288
    %v417 = vround.ne.pseudo %v289
    %v418 = vround.ne.pseudo %v290
    %v419 = vround.ne.pseudo %v291
    %v420 = vround.ne.pseudo %v292
    %v421 = vround.ne.pseudo %v293
    %v422 = vround.ne.pseudo %v294
    %v423 = vround.ne.pseudo %v295
    %v424 = vstv %s38
    %v425 = vadd.f32 %v296, %v424
    %v426 = vadd.f32 %v297, %v424
    %v427 = vadd.f32 %v298, %v424
    %v428 = vadd.f32 %v299, %v424
    %v429 = vadd.f32 %v300, %v424
    %v430 = vadd.f32 %v301, %v424
    %v431 = vadd.f32 %v302, %v424
    %v432 = vadd.f32 %v303, %v424
    %v433 = vadd.f32 %v304, %v424
    %v434 = vadd.f32 %v305, %v424
    %v435 = vadd.f32 %v306, %v424
    %v436 = vadd.f32 %v307, %v424
    %v437 = vadd.f32 %v308, %v424
    %v438 = vadd.f32 %v309, %v424
    %v439 = vadd.f32 %v310, %v424
    %v440 = vadd.f32 %v311, %v424
    %v441 = vadd.f32 %v312, %v424
    %v442 = vadd.f32 %v313, %v424
    %v443 = vadd.f32 %v314, %v424
    %v444 = vadd.f32 %v315, %v424
    %v445 = vadd.f32 %v316, %v424
    %v446 = vadd.f32 %v317, %v424
    %v447 = vadd.f32 %v318, %v424
    %v448 = vadd.f32 %v319, %v424
    %v449 = vadd.f32 %v320, %v424
    %v450 = vadd.f32 %v321, %v424
    %v451 = vadd.f32 %v322, %v424
    %v452 = vadd.f32 %v323, %v424
    %v453 = vadd.f32 %v324, %v424
    %v454 = vadd.f32 %v325, %v424
    %v455 = vadd.f32 %v326, %v424
    %v456 = vadd.f32 %v327, %v424
    %v457 = vadd.f32 %v328, %v424
    %v458 = vadd.f32 %v329, %v424
    %v459 = vadd.f32 %v330, %v424
    %v460 = vadd.f32 %v331, %v424
    %v461 = vadd.f32 %v332, %v424
    %v462 = vadd.f32 %v333, %v424
    %v463 = vadd.f32 %v334, %v424
    %v464 = vadd.f32 %v335, %v424
    %v465 = vadd.f32 %v336, %v424
    %v466 = vadd.f32 %v337, %v424
    %v467 = vadd.f32 %v338, %v424
    %v468 = vadd.f32 %v339, %v424
    %v469 = vadd.f32 %v340, %v424
    %v470 = vadd.f32 %v341, %v424
    %v471 = vadd.f32 %v342, %v424
    %v472 = vadd.f32 %v343, %v424
    %v473 = vadd.f32 %v344, %v424
    %v474 = vadd.f32 %v345, %v424
    %v475 = vadd.f32 %v346, %v424
    %v476 = vadd.f32 %v347, %v424
    %v477 = vadd.f32 %v348, %v424
    %v478 = vadd.f32 %v349, %v424
    %v479 = vadd.f32 %v350, %v424
    %v480 = vadd.f32 %v351, %v424
    %v481 = vadd.f32 %v352, %v424
    %v482 = vadd.f32 %v353, %v424
    %v483 = vadd.f32 %v354, %v424
    %v484 = vadd.f32 %v355, %v424
    %v485 = vadd.f32 %v356, %v424
    %v486 = vadd.f32 %v357, %v424
    %v487 = vadd.f32 %v358, %v424
    %v488 = vadd.f32 %v359, %v424
    %v489 = vadd.f32 %v360, %v424
    %v490 = vadd.f32 %v361, %v424
    %v491 = vadd.f32 %v362, %v424
    %v492 = vadd.f32 %v363, %v424
    %v493 = vadd.f32 %v364, %v424
    %v494 = vadd.f32 %v365, %v424
    %v495 = vadd.f32 %v366, %v424
    %v496 = vadd.f32 %v367, %v424
    %v497 = vadd.f32 %v368, %v424
    %v498 = vadd.f32 %v369, %v424
    %v499 = vadd.f32 %v370, %v424
    %v500 = vadd.f32 %v371, %v424
    %v501 = vadd.f32 %v372, %v424
    %v502 = vadd.f32 %v373, %v424
    %v503 = vadd.f32 %v374, %v424
    %v504 = vadd.f32 %v375, %v424
    %v505 = vadd.f32 %v376, %v424
    %v506 = vadd.f32 %v377, %v424
    %v507 = vadd.f32 %v378, %v424
    %v508 = vadd.f32 %v379, %v424
    %v509 = vadd.f32 %v380, %v424
    %v510 = vadd.f32 %v381, %v424
    %v511 = vadd.f32 %v382, %v424
    %v512 = vadd.f32 %v383, %v424
    %v513 = vadd.f32 %v384, %v424
    %v514 = vadd.f32 %v385, %v424
    %v515 = vadd.f32 %v386, %v424
    %v516 = vadd.f32 %v387, %v424
    %v517 = vadd.f32 %v388, %v424
    %v518 = vadd.f32 %v389, %v424
    %v519 = vadd.f32 %v390, %v424
    %v520 = vadd.f32 %v391, %v424
    %v521 = vadd.f32 %v392, %v424
    %v522 = vadd.f32 %v393, %v424
    %v523 = vadd.f32 %v394, %v424
    %v524 = vadd.f32 %v395, %v424
    %v525 = vadd.f32 %v396, %v424
    %v526 = vadd.f32 %v397, %v424
    %v527 = vadd.f32 %v398, %v424
    %v528 = vadd.f32 %v399, %v424
    %v529 = vadd.f32 %v400, %v424
    %v530 = vadd.f32 %v401, %v424
    %v531 = vadd.f32 %v402, %v424
    %v532 = vadd.f32 %v403, %v424
    %v533 = vadd.f32 %v404, %v424
    %v534 = vadd.f32 %v405, %v424
    %v535 = vadd.f32 %v406, %v424
    %v536 = vadd.f32 %v407, %v424
    %v537 = vadd.f32 %v408, %v424
    %v538 = vadd.f32 %v409, %v424
    %v539 = vadd.f32 %v410, %v424
    %v540 = vadd.f32 %v411, %v424
    %v541 = vadd.f32 %v412, %v424
    %v542 = vadd.f32 %v413, %v424
    %v543 = vadd.f32 %v414, %v424
    %v544 = vadd.f32 %v415, %v424
    %v545 = vadd.f32 %v416, %v424
    %v546 = vadd.f32 %v417, %v424
    %v547 = vadd.f32 %v418, %v424
    %v548 = vadd.f32 %v419, %v424
    %v549 = vadd.f32 %v420, %v424
    %v550 = vadd.f32 %v421, %v424
    %v551 = vadd.f32 %v422, %v424
    %v552 = vadd.f32 %v423, %v424
    %v553 = vmax.f32 %v425, -128.0
    %v554 = vmax.f32 %v426, -128.0
    %v555 = vmax.f32 %v427, -128.0
    %v556 = vmax.f32 %v428, -128.0
    %v557 = vmax.f32 %v429, -128.0
    %v558 = vmax.f32 %v430, -128.0
    %v559 = vmax.f32 %v431, -128.0
    %v560 = vmax.f32 %v432, -128.0
    %v561 = vmax.f32 %v433, -128.0
    %v562 = vmax.f32 %v434, -128.0
    %v563 = vmax.f32 %v435, -128.0
    %v564 = vmax.f32 %v436, -128.0
    %v565 = vmax.f32 %v437, -128.0
    %v566 = vmax.f32 %v438, -128.0
    %v567 = vmax.f32 %v439, -128.0
    %v568 = vmax.f32 %v440, -128.0
    %v569 = vmax.f32 %v441, -128.0
    %v570 = vmax.f32 %v442, -128.0
    %v571 = vmax.f32 %v443, -128.0
    %v572 = vmax.f32 %v444, -128.0
    %v573 = vmax.f32 %v445, -128.0
    %v574 = vmax.f32 %v446, -128.0
    %v575 = vmax.f32 %v447, -128.0
    %v576 = vmax.f32 %v448, -128.0
    %v577 = vmax.f32 %v449, -128.0
    %v578 = vmax.f32 %v450, -128.0
    %v579 = vmax.f32 %v451, -128.0
    %v580 = vmax.f32 %v452, -128.0
    %v581 = vmax.f32 %v453, -128.0
    %v582 = vmax.f32 %v454, -128.0
    %v583 = vmax.f32 %v455, -128.0
    %v584 = vmax.f32 %v456, -128.0
    %v585 = vmax.f32 %v457, -128.0
    %v586 = vmax.f32 %v458, -128.0
    %v587 = vmax.f32 %v459, -128.0
    %v588 = vmax.f32 %v460, -128.0
    %v589 = vmax.f32 %v461, -128.0
    %v590 = vmax.f32 %v462, -128.0
    %v591 = vmax.f32 %v463, -128.0
    %v592 = vmax.f32 %v464, -128.0
    %v593 = vmax.f32 %v465, -128.0
    %v594 = vmax.f32 %v466, -128.0
    %v595 = vmax.f32 %v467, -128.0
    %v596 = vmax.f32 %v468, -128.0
    %v597 = vmax.f32 %v469, -128.0
    %v598 = vmax.f32 %v470, -128.0
    %v599 = vmax.f32 %v471, -128.0
    %v600 = vmax.f32 %v472, -128.0
    %v601 = vmax.f32 %v473, -128.0
    %v602 = vmax.f32 %v474, -128.0
    %v603 = vmax.f32 %v475, -128.0
    %v604 = vmax.f32 %v476, -128.0
    %v605 = vmax.f32 %v477, -128.0
    %v606 = vmax.f32 %v478, -128.0
    %v607 = vmax.f32 %v479, -128.0
    %v608 = vmax.f32 %v480, -128.0
    %v609 = vmax.f32 %v481, -128.0
    %v610 = vmax.f32 %v482, -128.0
    %v611 = vmax.f32 %v483, -128.0
    %v612 = vmax.f32 %v484, -128.0
    %v613 = vmax.f32 %v485, -128.0
    %v614 = vmax.f32 %v486, -128.0
    %v615 = vmax.f32 %v487, -128.0
    %v616 = vmax.f32 %v488, -128.0
    %v617 = vmax.f32 %v489, -128.0
    %v618 = vmax.f32 %v490, -128.0
    %v619 = vmax.f32 %v491, -128.0
    %v620 = vmax.f32 %v492, -128.0
    %v621 = vmax.f32 %v493, -128.0
    %v622 = vmax.f32 %v494, -128.0
    %v623 = vmax.f32 %v495, -128.0
    %v624 = vmax.f32 %v496, -128.0
    %v625 = vmax.f32 %v497, -128.0
    %v626 = vmax.f32 %v498, -128.0
    %v627 = vmax.f32 %v499, -128.0
    %v628 = vmax.f32 %v500, -128.0
    %v629 = vmax.f32 %v501, -128.0
    %v630 = vmax.f32 %v502, -128.0
    %v631 = vmax.f32 %v503, -128.0
    %v632 = vmax.f32 %v504, -128.0
    %v633 = vmax.f32 %v505, -128.0
    %v634 = vmax.f32 %v506, -128.0
    %v635 = vmax.f32 %v507, -128.0
    %v636 = vmax.f32 %v508, -128.0
    %v637 = vmax.f32 %v509, -128.0
    %v638 = vmax.f32 %v510, -128.0
    %v639 = vmax.f32 %v511, -128.0
    %v640 = vmax.f32 %v512, -128.0
    %v641 = vmax.f32 %v513, -128.0
    %v642 = vmax.f32 %v514, -128.0
    %v643 = vmax.f32 %v515, -128.0
    %v644 = vmax.f32 %v516, -128.0
    %v645 = vmax.f32 %v517, -128.0
    %v646 = vmax.f32 %v518, -128.0
    %v647 = vmax.f32 %v519, -128.0
    %v648 = vmax.f32 %v520, -128.0
    %v649 = vmax.f32 %v521, -128.0
    %v650 = vmax.f32 %v522, -128.0
    %v651 = vmax.f32 %v523, -128.0
    %v652 = vmax.f32 %v524, -128.0
    %v653 = vmax.f32 %v525, -128.0
    %v654 = vmax.f32 %v526, -128.0
    %v655 = vmax.f32 %v527, -128.0
    %v656 = vmax.f32 %v528, -128.0
    %v657 = vmax.f32 %v529, -128.0
    %v658 = vmax.f32 %v530, -128.0
    %v659 = vmax.f32 %v531, -128.0
    %v660 = vmax.f32 %v532, -128.0
    %v661 = vmax.f32 %v533, -128.0
    %v662 = vmax.f32 %v534, -128.0
    %v663 = vmax.f32 %v535, -128.0
    %v664 = vmax.f32 %v536, -128.0
    %v665 = vmax.f32 %v537, -128.0
    %v666 = vmax.f32 %v538, -128.0
    %v667 = vmax.f32 %v539, -128.0
    %v668 = vmax.f32 %v540, -128.0
    %v669 = vmax.f32 %v541, -128.0
    %v670 = vmax.f32 %v542, -128.0
    %v671 = vmax.f32 %v543, -128.0
    %v672 = vmax.f32 %v544, -128.0
    %v673 = vmax.f32 %v545, -128.0
    %v674 = vmax.f32 %v546, -128.0
    %v675 = vmax.f32 %v547, -128.0
    %v676 = vmax.f32 %v548, -128.0
    %v677 = vmax.f32 %v549, -128.0
    %v678 = vmax.f32 %v550, -128.0
    %v679 = vmax.f32 %v551, -128.0
    %v680 = vmax.f32 %v552, -128.0
    %v681 = vmin.f32 %v553, 127.0
    %v682 = vmin.f32 %v554, 127.0
    %v683 = vmin.f32 %v555, 127.0
    %v684 = vmin.f32 %v556, 127.0
    %v685 = vmin.f32 %v557, 127.0
    %v686 = vmin.f32 %v558, 127.0
    %v687 = vmin.f32 %v559, 127.0
    %v688 = vmin.f32 %v560, 127.0
    %v689 = vmin.f32 %v561, 127.0
    %v690 = vmin.f32 %v562, 127.0
    %v691 = vmin.f32 %v563, 127.0
    %v692 = vmin.f32 %v564, 127.0
    %v693 = vmin.f32 %v565, 127.0
    %v694 = vmin.f32 %v566, 127.0
    %v695 = vmin.f32 %v567, 127.0
    %v696 = vmin.f32 %v568, 127.0
    %v697 = vmin.f32 %v569, 127.0
    %v698 = vmin.f32 %v570, 127.0
    %v699 = vmin.f32 %v571, 127.0
    %v700 = vmin.f32 %v572, 127.0
    %v701 = vmin.f32 %v573, 127.0
    %v702 = vmin.f32 %v574, 127.0
    %v703 = vmin.f32 %v575, 127.0
    %v704 = vmin.f32 %v576, 127.0
    %v705 = vmin.f32 %v577, 127.0
    %v706 = vmin.f32 %v578, 127.0
    %v707 = vmin.f32 %v579, 127.0
    %v708 = vmin.f32 %v580, 127.0
    %v709 = vmin.f32 %v581, 127.0
    %v710 = vmin.f32 %v582, 127.0
    %v711 = vmin.f32 %v583, 127.0
    %v712 = vmin.f32 %v584, 127.0
    %v713 = vmin.f32 %v585, 127.0
    %v714 = vmin.f32 %v586, 127.0
    %v715 = vmin.f32 %v587, 127.0
    %v716 = vmin.f32 %v588, 127.0
    %v717 = vmin.f32 %v589, 127.0
    %v718 = vmin.f32 %v590, 127.0
    %v719 = vmin.f32 %v591, 127.0
    %v720 = vmin.f32 %v592, 127.0
    %v721 = vmin.f32 %v593, 127.0
    %v722 = vmin.f32 %v594, 127.0
    %v723 = vmin.f32 %v595, 127.0
    %v724 = vmin.f32 %v596, 127.0
    %v725 = vmin.f32 %v597, 127.0
    %v726 = vmin.f32 %v598, 127.0
    %v727 = vmin.f32 %v599, 127.0
    %v728 = vmin.f32 %v600, 127.0
    %v729 = vmin.f32 %v601, 127.0
    %v730 = vmin.f32 %v602, 127.0
    %v731 = vmin.f32 %v603, 127.0
    %v732 = vmin.f32 %v604, 127.0
    %v733 = vmin.f32 %v605, 127.0
    %v734 = vmin.f32 %v606, 127.0
    %v735 = vmin.f32 %v607, 127.0
    %v736 = vmin.f32 %v608, 127.0
    %v737 = vmin.f32 %v609, 127.0
    %v738 = vmin.f32 %v610, 127.0
    %v739 = vmin.f32 %v611, 127.0
    %v740 = vmin.f32 %v612, 127.0
    %v741 = vmin.f32 %v613, 127.0
    %v742 = vmin.f32 %v614, 127.0
    %v743 = vmin.f32 %v615, 127.0
    %v744 = vmin.f32 %v616, 127.0
    %v745 = vmin.f32 %v617, 127.0
    %v746 = vmin.f32 %v618, 127.0
    %v747 = vmin.f32 %v619, 127.0
    %v748 = vmin.f32 %v620, 127.0
    %v749 = vmin.f32 %v621, 127.0
    %v750 = vmin.f32 %v622, 127.0
    %v751 = vmin.f32 %v623, 127.0
    %v752 = vmin.f32 %v624, 127.0
    %v753 = vmin.f32 %v625, 127.0
    %v754 = vmin.f32 %v626, 127.0
    %v755 = vmin.f32 %v627, 127.0
    %v756 = vmin.f32 %v628, 127.0
    %v757 = vmin.f32 %v629, 127.0
    %v758 = vmin.f32 %v630, 127.0
    %v759 = vmin.f32 %v631, 127.0
    %v760 = vmin.f32 %v632, 127.0
    %v761 = vmin.f32 %v633, 127.0
    %v762 = vmin.f32 %v634, 127.0
    %v763 = vmin.f32 %v635, 127.0
    %v764 = vmin.f32 %v636, 127.0
    %v765 = vmin.f32 %v637, 127.0
    %v766 = vmin.f32 %v638, 127.0
    %v767 = vmin.f32 %v639, 127.0
    %v768 = vmin.f32 %v640, 127.0
    %v769 = vmin.f32 %v641, 127.0
    %v770 = vmin.f32 %v642, 127.0
    %v771 = vmin.f32 %v643, 127.0
    %v772 = vmin.f32 %v644, 127.0
    %v773 = vmin.f32 %v645, 127.0
    %v774 = vmin.f32 %v646, 127.0
    %v775 = vmin.f32 %v647, 127.0
    %v776 = vmin.f32 %v648, 127.0
    %v777 = vmin.f32 %v649, 127.0
    %v778 = vmin.f32 %v650, 127.0
    %v779 = vmin.f32 %v651, 127.0
    %v780 = vmin.f32 %v652, 127.0
    %v781 = vmin.f32 %v653, 127.0
    %v782 = vmin.f32 %v654, 127.0
    %v783 = vmin.f32 %v655, 127.0
    %v784 = vmin.f32 %v656, 127.0
    %v785 = vmin.f32 %v657, 127.0
    %v786 = vmin.f32 %v658, 127.0
    %v787 = vmin.f32 %v659, 127.0
    %v788 = vmin.f32 %v660, 127.0
    %v789 = vmin.f32 %v661, 127.0
    %v790 = vmin.f32 %v662, 127.0
    %v791 = vmin.f32 %v663, 127.0
    %v792 = vmin.f32 %v664, 127.0
    %v793 = vmin.f32 %v665, 127.0
    %v794 = vmin.f32 %v666, 127.0
    %v795 = vmin.f32 %v667, 127.0
    %v796 = vmin.f32 %v668, 127.0
    %v797 = vmin.f32 %v669, 127.0
    %v798 = vmin.f32 %v670, 127.0
    %v799 = vmin.f32 %v671, 127.0
    %v800 = vmin.f32 %v672, 127.0
    %v801 = vmin.f32 %v673, 127.0
    %v802 = vmin.f32 %v674, 127.0
    %v803 = vmin.f32 %v675, 127.0
    %v804 = vmin.f32 %v676, 127.0
    %v805 = vmin.f32 %v677, 127.0
    %v806 = vmin.f32 %v678, 127.0
    %v807 = vmin.f32 %v679, 127.0
    %v808 = vmin.f32 %v680, 127.0
    %v809 = vmax.f32 %v681, -128.0
    %v810 = vmax.f32 %v682, -128.0
    %v811 = vmax.f32 %v683, -128.0
    %v812 = vmax.f32 %v684, -128.0
    %v813 = vmax.f32 %v685, -128.0
    %v814 = vmax.f32 %v686, -128.0
    %v815 = vmax.f32 %v687, -128.0
    %v816 = vmax.f32 %v688, -128.0
    %v817 = vmax.f32 %v689, -128.0
    %v818 = vmax.f32 %v690, -128.0
    %v819 = vmax.f32 %v691, -128.0
    %v820 = vmax.f32 %v692, -128.0
    %v821 = vmax.f32 %v693, -128.0
    %v822 = vmax.f32 %v694, -128.0
    %v823 = vmax.f32 %v695, -128.0
    %v824 = vmax.f32 %v696, -128.0
    %v825 = vmax.f32 %v697, -128.0
    %v826 = vmax.f32 %v698, -128.0
    %v827 = vmax.f32 %v699, -128.0
    %v828 = vmax.f32 %v700, -128.0
    %v829 = vmax.f32 %v701, -128.0
    %v830 = vmax.f32 %v702, -128.0
    %v831 = vmax.f32 %v703, -128.0
    %v832 = vmax.f32 %v704, -128.0
    %v833 = vmax.f32 %v705, -128.0
    %v834 = vmax.f32 %v706, -128.0
    %v835 = vmax.f32 %v707, -128.0
    %v836 = vmax.f32 %v708, -128.0
    %v837 = vmax.f32 %v709, -128.0
    %v838 = vmax.f32 %v710, -128.0
    %v839 = vmax.f32 %v711, -128.0
    %v840 = vmax.f32 %v712, -128.0
    %v841 = vmax.f32 %v713, -128.0
    %v842 = vmax.f32 %v714, -128.0
    %v843 = vmax.f32 %v715, -128.0
    %v844 = vmax.f32 %v716, -128.0
    %v845 = vmax.f32 %v717, -128.0
    %v846 = vmax.f32 %v718, -128.0
    %v847 = vmax.f32 %v719, -128.0
    %v848 = vmax.f32 %v720, -128.0
    %v849 = vmax.f32 %v721, -128.0
    %v850 = vmax.f32 %v722, -128.0
    %v851 = vmax.f32 %v723, -128.0
    %v852 = vmax.f32 %v724, -128.0
    %v853 = vmax.f32 %v725, -128.0
    %v854 = vmax.f32 %v726, -128.0
    %v855 = vmax.f32 %v727, -128.0
    %v856 = vmax.f32 %v728, -128.0
    %v857 = vmax.f32 %v729, -128.0
    %v858 = vmax.f32 %v730, -128.0
    %v859 = vmax.f32 %v731, -128.0
    %v860 = vmax.f32 %v732, -128.0
    %v861 = vmax.f32 %v733, -128.0
    %v862 = vmax.f32 %v734, -128.0
    %v863 = vmax.f32 %v735, -128.0
    %v864 = vmax.f32 %v736, -128.0
    %v865 = vmax.f32 %v737, -128.0
    %v866 = vmax.f32 %v738, -128.0
    %v867 = vmax.f32 %v739, -128.0
    %v868 = vmax.f32 %v740, -128.0
    %v869 = vmax.f32 %v741, -128.0
    %v870 = vmax.f32 %v742, -128.0
    %v871 = vmax.f32 %v743, -128.0
    %v872 = vmax.f32 %v744, -128.0
    %v873 = vmax.f32 %v745, -128.0
    %v874 = vmax.f32 %v746, -128.0
    %v875 = vmax.f32 %v747, -128.0
    %v876 = vmax.f32 %v748, -128.0
    %v877 = vmax.f32 %v749, -128.0
    %v878 = vmax.f32 %v750, -128.0
    %v879 = vmax.f32 %v751, -128.0
    %v880 = vmax.f32 %v752, -128.0
    %v881 = vmax.f32 %v753, -128.0
    %v882 = vmax.f32 %v754, -128.0
    %v883 = vmax.f32 %v755, -128.0
    %v884 = vmax.f32 %v756, -128.0
    %v885 = vmax.f32 %v757, -128.0
    %v886 = vmax.f32 %v758, -128.0
    %v887 = vmax.f32 %v759, -128.0
    %v888 = vmax.f32 %v760, -128.0
    %v889 = vmax.f32 %v761, -128.0
    %v890 = vmax.f32 %v762, -128.0
    %v891 = vmax.f32 %v763, -128.0
    %v892 = vmax.f32 %v764, -128.0
    %v893 = vmax.f32 %v765, -128.0
    %v894 = vmax.f32 %v766, -128.0
    %v895 = vmax.f32 %v767, -128.0
    %v896 = vmax.f32 %v768, -128.0
    %v897 = vmax.f32 %v769, -128.0
    %v898 = vmax.f32 %v770, -128.0
    %v899 = vmax.f32 %v771, -128.0
    %v900 = vmax.f32 %v772, -128.0
    %v901 = vmax.f32 %v773, -128.0
    %v902 = vmax.f32 %v774, -128.0
    %v903 = vmax.f32 %v775, -128.0
    %v904 = vmax.f32 %v776, -128.0
    %v905 = vmax.f32 %v777, -128.0
    %v906 = vmax.f32 %v778, -128.0
    %v907 = vmax.f32 %v779, -128.0
    %v908 = vmax.f32 %v780, -128.0
    %v909 = vmax.f32 %v781, -128.0
    %v910 = vmax.f32 %v782, -128.0
    %v911 = vmax.f32 %v783, -128.0
    %v912 = vmax.f32 %v784, -128.0
    %v913 = vmax.f32 %v785, -128.0
    %v914 = vmax.f32 %v786, -128.0
    %v915 = vmax.f32 %v787, -128.0
    %v916 = vmax.f32 %v788, -128.0
    %v917 = vmax.f32 %v789, -128.0
    %v918 = vmax.f32 %v790, -128.0
    %v919 = vmax.f32 %v791, -128.0
    %v920 = vmax.f32 %v792, -128.0
    %v921 = vmax.f32 %v793, -128.0
    %v922 = vmax.f32 %v794, -128.0
    %v923 = vmax.f32 %v795, -128.0
    %v924 = vmax.f32 %v796, -128.0
    %v925 = vmax.f32 %v797, -128.0
    %v926 = vmax.f32 %v798, -128.0
    %v927 = vmax.f32 %v799, -128.0
    %v928 = vmax.f32 %v800, -128.0
    %v929 = vmax.f32 %v801, -128.0
    %v930 = vmax.f32 %v802, -128.0
    %v931 = vmax.f32 %v803, -128.0
    %v932 = vmax.f32 %v804, -128.0
    %v933 = vmax.f32 %v805, -128.0
    %v934 = vmax.f32 %v806, -128.0
    %v935 = vmax.f32 %v807, -128.0
    %v936 = vmax.f32 %v808, -128.0
    %v937 = vmin.f32 %v809, 127.0
    %v938 = vmin.f32 %v810, 127.0
    %v939 = vmin.f32 %v811, 127.0
    %v940 = vmin.f32 %v812, 127.0
    %v941 = vmin.f32 %v813, 127.0
    %v942 = vmin.f32 %v814, 127.0
    %v943 = vmin.f32 %v815, 127.0
    %v944 = vmin.f32 %v816, 127.0
    %v945 = vmin.f32 %v817, 127.0
    %v946 = vmin.f32 %v818, 127.0
    %v947 = vmin.f32 %v819, 127.0
    %v948 = vmin.f32 %v820, 127.0
    %v949 = vmin.f32 %v821, 127.0
    %v950 = vmin.f32 %v822, 127.0
    %v951 = vmin.f32 %v823, 127.0
    %v952 = vmin.f32 %v824, 127.0
    %v953 = vmin.f32 %v825, 127.0
    %v954 = vmin.f32 %v826, 127.0
    %v955 = vmin.f32 %v827, 127.0
    %v956 = vmin.f32 %v828, 127.0
    %v957 = vmin.f32 %v829, 127.0
    %v958 = vmin.f32 %v830, 127.0
    %v959 = vmin.f32 %v831, 127.0
    %v960 = vmin.f32 %v832, 127.0
    %v961 = vmin.f32 %v833, 127.0
    %v962 = vmin.f32 %v834, 127.0
    %v963 = vmin.f32 %v835, 127.0
    %v964 = vmin.f32 %v836, 127.0
    %v965 = vmin.f32 %v837, 127.0
    %v966 = vmin.f32 %v838, 127.0
    %v967 = vmin.f32 %v839, 127.0
    %v968 = vmin.f32 %v840, 127.0
    %v969 = vmin.f32 %v841, 127.0
    %v970 = vmin.f32 %v842, 127.0
    %v971 = vmin.f32 %v843, 127.0
    %v972 = vmin.f32 %v844, 127.0
    %v973 = vmin.f32 %v845, 127.0
    %v974 = vmin.f32 %v846, 127.0
    %v975 = vmin.f32 %v847, 127.0
    %v976 = vmin.f32 %v848, 127.0
    %v977 = vmin.f32 %v849, 127.0
    %v978 = vmin.f32 %v850, 127.0
    %v979 = vmin.f32 %v851, 127.0
    %v980 = vmin.f32 %v852, 127.0
    %v981 = vmin.f32 %v853, 127.0
    %v982 = vmin.f32 %v854, 127.0
    %v983 = vmin.f32 %v855, 127.0
    %v984 = vmin.f32 %v856, 127.0
    %v985 = vmin.f32 %v857, 127.0
    %v986 = vmin.f32 %v858, 127.0
    %v987 = vmin.f32 %v859, 127.0
    %v988 = vmin.f32 %v860, 127.0
    %v989 = vmin.f32 %v861, 127.0
    %v990 = vmin.f32 %v862, 127.0
    %v991 = vmin.f32 %v863, 127.0
    %v992 = vmin.f32 %v864, 127.0
    %v993 = vmin.f32 %v865, 127.0
    %v994 = vmin.f32 %v866, 127.0
    %v995 = vmin.f32 %v867, 127.0
    %v996 = vmin.f32 %v868, 127.0
    %v997 = vmin.f32 %v869, 127.0
    %v998 = vmin.f32 %v870, 127.0
    %v999 = vmin.f32 %v871, 127.0
    %v1000 = vmin.f32 %v872, 127.0
    %v1001 = vmin.f32 %v873, 127.0
    %v1002 = vmin.f32 %v874, 127.0
    %v1003 = vmin.f32 %v875, 127.0
    %v1004 = vmin.f32 %v876, 127.0
    %v1005 = vmin.f32 %v877, 127.0
    %v1006 = vmin.f32 %v878, 127.0
    %v1007 = vmin.f32 %v879, 127.0
    %v1008 = vmin.f32 %v880, 127.0
    %v1009 = vmin.f32 %v881, 127.0
    %v1010 = vmin.f32 %v882, 127.0
    %v1011 = vmin.f32 %v883, 127.0
    %v1012 = vmin.f32 %v884, 127.0
    %v1013 = vmin.f32 %v885, 127.0
    %v1014 = vmin.f32 %v886, 127.0
    %v1015 = vmin.f32 %v887, 127.0
    %v1016 = vmin.f32 %v888, 127.0
    %v1017 = vmin.f32 %v889, 127.0
    %v1018 = vmin.f32 %v890, 127.0
    %v1019 = vmin.f32 %v891, 127.0
    %v1020 = vmin.f32 %v892, 127.0
    %v1021 = vmin.f32 %v893, 127.0
    %v1022 = vmin.f32 %v894, 127.0
    %v1023 = vmin.f32 %v895, 127.0
    %v1024 = vmin.f32 %v896, 127.0
    %v1025 = vmin.f32 %v897, 127.0
    %v1026 = vmin.f32 %v898, 127.0
    %v1027 = vmin.f32 %v899, 127.0
    %v1028 = vmin.f32 %v900, 127.0
    %v1029 = vmin.f32 %v901, 127.0
    %v1030 = vmin.f32 %v902, 127.0
    %v1031 = vmin.f32 %v903, 127.0
    %v1032 = vmin.f32 %v904, 127.0
    %v1033 = vmin.f32 %v905, 127.0
    %v1034 = vmin.f32 %v906, 127.0
    %v1035 = vmin.f32 %v907, 127.0
    %v1036 = vmin.f32 %v908, 127.0
    %v1037 = vmin.f32 %v909, 127.0
    %v1038 = vmin.f32 %v910, 127.0
    %v1039 = vmin.f32 %v911, 127.0
    %v1040 = vmin.f32 %v912, 127.0
    %v1041 = vmin.f32 %v913, 127.0
    %v1042 = vmin.f32 %v914, 127.0
    %v1043 = vmin.f32 %v915, 127.0
    %v1044 = vmin.f32 %v916, 127.0
    %v1045 = vmin.f32 %v917, 127.0
    %v1046 = vmin.f32 %v918, 127.0
    %v1047 = vmin.f32 %v919, 127.0
    %v1048 = vmin.f32 %v920, 127.0
    %v1049 = vmin.f32 %v921, 127.0
    %v1050 = vmin.f32 %v922, 127.0
    %v1051 = vmin.f32 %v923, 127.0
    %v1052 = vmin.f32 %v924, 127.0
    %v1053 = vmin.f32 %v925, 127.0
    %v1054 = vmin.f32 %v926, 127.0
    %v1055 = vmin.f32 %v927, 127.0
    %v1056 = vmin.f32 %v928, 127.0
    %v1057 = vmin.f32 %v929, 127.0
    %v1058 = vmin.f32 %v930, 127.0
    %v1059 = vmin.f32 %v931, 127.0
    %v1060 = vmin.f32 %v932, 127.0
    %v1061 = vmin.f32 %v933, 127.0
    %v1062 = vmin.f32 %v934, 127.0
    %v1063 = vmin.f32 %v935, 127.0
    %v1064 = vmin.f32 %v936, 127.0
    %v1065 = vcvt.f32.s32.to.zero.pseudo %v937
    %v1066 = vcvt.f32.s32.to.zero.pseudo %v938
    %v1067 = vcvt.f32.s32.to.zero.pseudo %v939
    %v1068 = vcvt.f32.s32.to.zero.pseudo %v940
    %v1069 = vcvt.f32.s32.to.zero.pseudo %v941
    %v1070 = vcvt.f32.s32.to.zero.pseudo %v942
    %v1071 = vcvt.f32.s32.to.zero.pseudo %v943
    %v1072 = vcvt.f32.s32.to.zero.pseudo %v944
    %v1073 = vcvt.f32.s32.to.zero.pseudo %v945
    %v1074 = vcvt.f32.s32.to.zero.pseudo %v946
    %v1075 = vcvt.f32.s32.to.zero.pseudo %v947
    %v1076 = vcvt.f32.s32.to.zero.pseudo %v948
    %v1077 = vcvt.f32.s32.to.zero.pseudo %v949
    %v1078 = vcvt.f32.s32.to.zero.pseudo %v950
    %v1079 = vcvt.f32.s32.to.zero.pseudo %v951
    %v1080 = vcvt.f32.s32.to.zero.pseudo %v952
    %v1081 = vcvt.f32.s32.to.zero.pseudo %v953
    %v1082 = vcvt.f32.s32.to.zero.pseudo %v954
    %v1083 = vcvt.f32.s32.to.zero.pseudo %v955
    %v1084 = vcvt.f32.s32.to.zero.pseudo %v956
    %v1085 = vcvt.f32.s32.to.zero.pseudo %v957
    %v1086 = vcvt.f32.s32.to.zero.pseudo %v958
    %v1087 = vcvt.f32.s32.to.zero.pseudo %v959
    %v1088 = vcvt.f32.s32.to.zero.pseudo %v960
    %v1089 = vcvt.f32.s32.to.zero.pseudo %v961
    %v1090 = vcvt.f32.s32.to.zero.pseudo %v962
    %v1091 = vcvt.f32.s32.to.zero.pseudo %v963
    %v1092 = vcvt.f32.s32.to.zero.pseudo %v964
    %v1093 = vcvt.f32.s32.to.zero.pseudo %v965
    %v1094 = vcvt.f32.s32.to.zero.pseudo %v966
    %v1095 = vcvt.f32.s32.to.zero.pseudo %v967
    %v1096 = vcvt.f32.s32.to.zero.pseudo %v968
    %v1097 = vcvt.f32.s32.to.zero.pseudo %v969
    %v1098 = vcvt.f32.s32.to.zero.pseudo %v970
    %v1099 = vcvt.f32.s32.to.zero.pseudo %v971
    %v1100 = vcvt.f32.s32.to.zero.pseudo %v972
    %v1101 = vcvt.f32.s32.to.zero.pseudo %v973
    %v1102 = vcvt.f32.s32.to.zero.pseudo %v974
    %v1103 = vcvt.f32.s32.to.zero.pseudo %v975
    %v1104 = vcvt.f32.s32.to.zero.pseudo %v976
    %v1105 = vcvt.f32.s32.to.zero.pseudo %v977
    %v1106 = vcvt.f32.s32.to.zero.pseudo %v978
    %v1107 = vcvt.f32.s32.to.zero.pseudo %v979
    %v1108 = vcvt.f32.s32.to.zero.pseudo %v980
    %v1109 = vcvt.f32.s32.to.zero.pseudo %v981
    %v1110 = vcvt.f32.s32.to.zero.pseudo %v982
    %v1111 = vcvt.f32.s32.to.zero.pseudo %v983
    %v1112 = vcvt.f32.s32.to.zero.pseudo %v984
    %v1113 = vcvt.f32.s32.to.zero.pseudo %v985
    %v1114 = vcvt.f32.s32.to.zero.pseudo %v986
    %v1115 = vcvt.f32.s32.to.zero.pseudo %v987
    %v1116 = vcvt.f32.s32.to.zero.pseudo %v988
    %v1117 = vcvt.f32.s32.to.zero.pseudo %v989
    %v1118 = vcvt.f32.s32.to.zero.pseudo %v990
    %v1119 = vcvt.f32.s32.to.zero.pseudo %v991
    %v1120 = vcvt.f32.s32.to.zero.pseudo %v992
    %v1121 = vcvt.f32.s32.to.zero.pseudo %v993
    %v1122 = vcvt.f32.s32.to.zero.pseudo %v994
    %v1123 = vcvt.f32.s32.to.zero.pseudo %v995
    %v1124 = vcvt.f32.s32.to.zero.pseudo %v996
    %v1125 = vcvt.f32.s32.to.zero.pseudo %v997
    %v1126 = vcvt.f32.s32.to.zero.pseudo %v998
    %v1127 = vcvt.f32.s32.to.zero.pseudo %v999
    %v1128 = vcvt.f32.s32.to.zero.pseudo %v1000
    %v1129 = vcvt.f32.s32.to.zero.pseudo %v1001
    %v1130 = vcvt.f32.s32.to.zero.pseudo %v1002
    %v1131 = vcvt.f32.s32.to.zero.pseudo %v1003
    %v1132 = vcvt.f32.s32.to.zero.pseudo %v1004
    %v1133 = vcvt.f32.s32.to.zero.pseudo %v1005
    %v1134 = vcvt.f32.s32.to.zero.pseudo %v1006
    %v1135 = vcvt.f32.s32.to.zero.pseudo %v1007
    %v1136 = vcvt.f32.s32.to.zero.pseudo %v1008
    %v1137 = vcvt.f32.s32.to.zero.pseudo %v1009
    %v1138 = vcvt.f32.s32.to.zero.pseudo %v1010
    %v1139 = vcvt.f32.s32.to.zero.pseudo %v1011
    %v1140 = vcvt.f32.s32.to.zero.pseudo %v1012
    %v1141 = vcvt.f32.s32.to.zero.pseudo %v1013
    %v1142 = vcvt.f32.s32.to.zero.pseudo %v1014
    %v1143 = vcvt.f32.s32.to.zero.pseudo %v1015
    %v1144 = vcvt.f32.s32.to.zero.pseudo %v1016
    %v1145 = vcvt.f32.s32.to.zero.pseudo %v1017
    %v1146 = vcvt.f32.s32.to.zero.pseudo %v1018
    %v1147 = vcvt.f32.s32.to.zero.pseudo %v1019
    %v1148 = vcvt.f32.s32.to.zero.pseudo %v1020
    %v1149 = vcvt.f32.s32.to.zero.pseudo %v1021
    %v1150 = vcvt.f32.s32.to.zero.pseudo %v1022
    %v1151 = vcvt.f32.s32.to.zero.pseudo %v1023
    %v1152 = vcvt.f32.s32.to.zero.pseudo %v1024
    %v1153 = vcvt.f32.s32.to.zero.pseudo %v1025
    %v1154 = vcvt.f32.s32.to.zero.pseudo %v1026
    %v1155 = vcvt.f32.s32.to.zero.pseudo %v1027
    %v1156 = vcvt.f32.s32.to.zero.pseudo %v1028
    %v1157 = vcvt.f32.s32.to.zero.pseudo %v1029
    %v1158 = vcvt.f32.s32.to.zero.pseudo %v1030
    %v1159 = vcvt.f32.s32.to.zero.pseudo %v1031
    %v1160 = vcvt.f32.s32.to.zero.pseudo %v1032
    %v1161 = vcvt.f32.s32.to.zero.pseudo %v1033
    %v1162 = vcvt.f32.s32.to.zero.pseudo %v1034
    %v1163 = vcvt.f32.s32.to.zero.pseudo %v1035
    %v1164 = vcvt.f32.s32.to.zero.pseudo %v1036
    %v1165 = vcvt.f32.s32.to.zero.pseudo %v1037
    %v1166 = vcvt.f32.s32.to.zero.pseudo %v1038
    %v1167 = vcvt.f32.s32.to.zero.pseudo %v1039
    %v1168 = vcvt.f32.s32.to.zero.pseudo %v1040
    %v1169 = vcvt.f32.s32.to.zero.pseudo %v1041
    %v1170 = vcvt.f32.s32.to.zero.pseudo %v1042
    %v1171 = vcvt.f32.s32.to.zero.pseudo %v1043
    %v1172 = vcvt.f32.s32.to.zero.pseudo %v1044
    %v1173 = vcvt.f32.s32.to.zero.pseudo %v1045
    %v1174 = vcvt.f32.s32.to.zero.pseudo %v1046
    %v1175 = vcvt.f32.s32.to.zero.pseudo %v1047
    %v1176 = vcvt.f32.s32.to.zero.pseudo %v1048
    %v1177 = vcvt.f32.s32.to.zero.pseudo %v1049
    %v1178 = vcvt.f32.s32.to.zero.pseudo %v1050
    %v1179 = vcvt.f32.s32.to.zero.pseudo %v1051
    %v1180 = vcvt.f32.s32.to.zero.pseudo %v1052
    %v1181 = vcvt.f32.s32.to.zero.pseudo %v1053
    %v1182 = vcvt.f32.s32.to.zero.pseudo %v1054
    %v1183 = vcvt.f32.s32.to.zero.pseudo %v1055
    %v1184 = vcvt.f32.s32.to.zero.pseudo %v1056
    %v1185 = vcvt.f32.s32.to.zero.pseudo %v1057
    %v1186 = vcvt.f32.s32.to.zero.pseudo %v1058
    %v1187 = vcvt.f32.s32.to.zero.pseudo %v1059
    %v1188 = vcvt.f32.s32.to.zero.pseudo %v1060
    %v1189 = vcvt.f32.s32.to.zero.pseudo %v1061
    %v1190 = vcvt.f32.s32.to.zero.pseudo %v1062
    %v1191 = vcvt.f32.s32.to.zero.pseudo %v1063
    %v1192 = vcvt.f32.s32.to.zero.pseudo %v1064
    %v1193 = vpack.c.b16 %v1073, %v1065
    %v1194 = vpack.c.b16 %v1089, %v1081
    %v1195 = vpack.c.b8 %v1194, %v1193
    %v1196 = vpack.c.b16 %v1074, %v1066
    %v1197 = vpack.c.b16 %v1090, %v1082
    %v1198 = vpack.c.b8 %v1197, %v1196
    %v1199 = vpack.c.b16 %v1075, %v1067
    %v1200 = vpack.c.b16 %v1091, %v1083
    %v1201 = vpack.c.b8 %v1200, %v1199
    %v1202 = vpack.c.b16 %v1076, %v1068
    %v1203 = vpack.c.b16 %v1092, %v1084
    %v1204 = vpack.c.b8 %v1203, %v1202
    %v1205 = vpack.c.b16 %v1077, %v1069
    %v1206 = vpack.c.b16 %v1093, %v1085
    %v1207 = vpack.c.b8 %v1206, %v1205
    %v1208 = vpack.c.b16 %v1078, %v1070
    %v1209 = vpack.c.b16 %v1094, %v1086
    %v1210 = vpack.c.b8 %v1209, %v1208
    %v1211 = vpack.c.b16 %v1079, %v1071
    %v1212 = vpack.c.b16 %v1095, %v1087
    %v1213 = vpack.c.b8 %v1212, %v1211
    %v1214 = vpack.c.b16 %v1080, %v1072
    %v1215 = vpack.c.b16 %v1096, %v1088
    %v1216 = vpack.c.b8 %v1215, %v1214
    %v1217 = vpack.c.b16 %v1105, %v1097
    %v1218 = vpack.c.b16 %v1121, %v1113
    %v1219 = vpack.c.b8 %v1218, %v1217
    %v1220 = vpack.c.b16 %v1106, %v1098
    %v1221 = vpack.c.b16 %v1122, %v1114
    %v1222 = vpack.c.b8 %v1221, %v1220
    %v1223 = vpack.c.b16 %v1107, %v1099
    %v1224 = vpack.c.b16 %v1123, %v1115
    %v1225 = vpack.c.b8 %v1224, %v1223
    %v1226 = vpack.c.b16 %v1108, %v1100
    %v1227 = vpack.c.b16 %v1124, %v1116
    %v1228 = vpack.c.b8 %v1227, %v1226
    %v1229 = vpack.c.b16 %v1109, %v1101
    %v1230 = vpack.c.b16 %v1125, %v1117
    %v1231 = vpack.c.b8 %v1230, %v1229
    %v1232 = vpack.c.b16 %v1110, %v1102
    %v1233 = vpack.c.b16 %v1126, %v1118
    %v1234 = vpack.c.b8 %v1233, %v1232
    %v1235 = vpack.c.b16 %v1111, %v1103
    %v1236 = vpack.c.b16 %v1127, %v1119
    %v1237 = vpack.c.b8 %v1236, %v1235
    %v1238 = vpack.c.b16 %v1112, %v1104
    %v1239 = vpack.c.b16 %v1128, %v1120
    %v1240 = vpack.c.b8 %v1239, %v1238
    %v1241 = vpack.c.b16 %v1137, %v1129
    %v1242 = vpack.c.b16 %v1153, %v1145
    %v1243 = vpack.c.b8 %v1242, %v1241
    %v1244 = vpack.c.b16 %v1138, %v1130
    %v1245 = vpack.c.b16 %v1154, %v1146
    %v1246 = vpack.c.b8 %v1245, %v1244
    %v1247 = vpack.c.b16 %v1139, %v1131
    %v1248 = vpack.c.b16 %v1155, %v1147
    %v1249 = vpack.c.b8 %v1248, %v1247
    %v1250 = vpack.c.b16 %v1140, %v1132
    %v1251 = vpack.c.b16 %v1156, %v1148
    %v1252 = vpack.c.b8 %v1251, %v1250
    %v1253 = vpack.c.b16 %v1141, %v1133
    %v1254 = vpack.c.b16 %v1157, %v1149
    %v1255 = vpack.c.b8 %v1254, %v1253
    %v1256 = vpack.c.b16 %v1142, %v1134
    %v1257 = vpack.c.b16 %v1158, %v1150
    %v1258 = vpack.c.b8 %v1257, %v1256
    %v1259 = vpack.c.b16 %v1143, %v1135
    %v1260 = vpack.c.b16 %v1159, %v1151
    %v1261 = vpack.c.b8 %v1260, %v1259
    %v1262 = vpack.c.b16 %v1144, %v1136
    %v1263 = vpack.c.b16 %v1160, %v1152
    %v1264 = vpack.c.b8 %v1263, %v1262
    %v1265 = vpack.c.b16 %v1169, %v1161
    %v1266 = vpack.c.b16 %v1185, %v1177
    %v1267 = vpack.c.b8 %v1266, %v1265
    %v1268 = vpack.c.b16 %v1170, %v1162
    %v1269 = vpack.c.b16 %v1186, %v1178
    %v1270 = vpack.c.b8 %v1269, %v1268
    %v1271 = vpack.c.b16 %v1171, %v1163
    %v1272 = vpack.c.b16 %v1187, %v1179
    %v1273 = vpack.c.b8 %v1272, %v1271
    %v1274 = vpack.c.b16 %v1172, %v1164
    %v1275 = vpack.c.b16 %v1188, %v1180
    %v1276 = vpack.c.b8 %v1275, %v1274
    %v1277 = vpack.c.b16 %v1173, %v1165
    %v1278 = vpack.c.b16 %v1189, %v1181
    %v1279 = vpack.c.b8 %v1278, %v1277
    %v1280 = vpack.c.b16 %v1174, %v1166
    %v1281 = vpack.c.b16 %v1190, %v1182
    %v1282 = vpack.c.b8 %v1281, %v1280
    %v1283 = vpack.c.b16 %v1175, %v1167
    %v1284 = vpack.c.b16 %v1191, %v1183
    %v1285 = vpack.c.b8 %v1284, %v1283
    %v1286 = vpack.c.b16 %v1176, %v1168
    %v1287 = vpack.c.b16 %v1192, %v1184
    %v1288 = vpack.c.b8 %v1287, %v1286
    %1289 = vst [vmem:[#allocation7] sm:$0xff] %v1195
    %1290 = vst [vmem:[#allocation7 + $0x8] sm:$0xff] %v1198
    %1291 = vst [vmem:[#allocation7 + $0x10] sm:$0xff] %v1201
    %1292 = vst [vmem:[#allocation7 + $0x18] sm:$0xff] %v1204
    %1293 = vst [vmem:[#allocation7 + $0x20] sm:$0xff] %v1207
    %1294 = vst [vmem:[#allocation7 + $0x28] sm:$0xff] %v1210
    %1295 = vst [vmem:[#allocation7 + $0x30] sm:$0xff] %v1213
    %1296 = vst [vmem:[#allocation7 + $0x38] sm:$0xff] %v1216
    %1297 = vst [vmem:[#allocation7 + $0x40] sm:$0xff] %v1219
    %1298 = vst [vmem:[#allocation7 + $0x48] sm:$0xff] %v1222
    %1299 = vst [vmem:[#allocation7 + $0x50] sm:$0xff] %v1225
    %1300 = vst [vmem:[#allocation7 + $0x58] sm:$0xff] %v1228
    %1301 = vst [vmem:[#allocation7 + $0x60] sm:$0xff] %v1231
    %1302 = vst [vmem:[#allocation7 + $0x68] sm:$0xff] %v1234
    %1303 = vst [vmem:[#allocation7 + $0x70] sm:$0xff] %v1237
    %1304 = vst [vmem:[#allocation7 + $0x78] sm:$0xff] %v1240
    %1305 = vst [vmem:[#allocation7 + $0x80] sm:$0xff] %v1243
    %1306 = vst [vmem:[#allocation7 + $0x88] sm:$0xff] %v1246
    %1307 = vst [vmem:[#allocation7 + $0x90] sm:$0xff] %v1249
    %1308 = vst [vmem:[#allocation7 + $0x98] sm:$0xff] %v1252
    %1309 = vst [vmem:[#allocation7 + $0xa0] sm:$0xff] %v1255
    %1310 = vst [vmem:[#allocation7 + $0xa8] sm:$0xff] %v1258
    %1311 = vst [vmem:[#allocation7 + $0xb0] sm:$0xff] %v1261
    %1312 = vst [vmem:[#allocation7 + $0xb8] sm:$0xff] %v1264
    %1313 = vst [vmem:[#allocation7 + $0xc0] sm:$0xff] %v1267
    %1314 = vst [vmem:[#allocation7 + $0xc8] sm:$0xff] %v1270
    %1315 = vst [vmem:[#allocation7 + $0xd0] sm:$0xff] %v1273
    %1316 = vst [vmem:[#allocation7 + $0xd8] sm:$0xff] %v1276
    %1317 = vst [vmem:[#allocation7 + $0xe0] sm:$0xff] %v1279
    %1318 = vst [vmem:[#allocation7 + $0xe8] sm:$0xff] %v1282
    %1319 = vst [vmem:[#allocation7 + $0xf0] sm:$0xff] %v1285
    %1320 = vst [vmem:[#allocation7 + $0xf8] sm:$0xff] %v1288
    // Predicated region
    $region18: #{tpu_custom_call.1} parent=1 // pred_check
      _
    $region19: #{tpu_custom_call.1} parent=1 // pred_check_branch
      %1322 = sbr.rel (0) target = $region21
    $region20: #{tpu_custom_call.1} parent=1 // pred_region
      %s1324 = ssub.s32 4096, 4096
      %1325 = vsyncadd [#allocation4], %s1324
      %s1326 = sshll.u32 [#allocation7], 4
      %s1327 = int_to_ptr.vmem [resolvable:$true] %s1326
      %1332 = dma.vmem_to_hbm [thread:$0]  %s1327, 4096, %s2, [#allocation4], 1024, 1024, 64
    $region21: #{tpu_custom_call.1} parent=1 // pred_fallthru
      _
    // Predicated region
    $region22: #{tpu_custom_call.1} parent=1 // pred_check
      _
    $region23: #{tpu_custom_call.1} parent=1 // pred_check_branch
      %1334 = sbr.rel (0) target = $region25
    $region24: #{tpu_custom_call.1} parent=1 // pred_region
      %1335 = dma.done [#allocation4], 4096
    $region25: #{tpu_custom_call.1} parent=1 // pred_fallthru
      _
    %1336 = vsyncpa [#allocation3], 1
    %1337 = vsyncpa [#allocation4], 1
    %1338 = vsyncpa [#allocation5], 1

</llo_original>
